<compile_context>
chip_gen: v5e
topology: v5e:2x2
jax: 0.10.0
libtpu: 0.0.40
codegen_flags: <defaults>
</compile_context>

<pallas_src>
import functools
import math

import jax
import jax.numpy as jnp
from jax.experimental import pallas as pl
from jax.experimental.pallas import tpu as pltpu


def _round_up(x, m):
    return (x + m - 1) // m * m


def _token_embedding_matmul_kernel(xc_ref, w_ref, o_ref, *, precision):
    # xc_ref: (TM, K)   im2col'd circular-conv rows (one tile of B*L)
    # w_ref:  (K, TN)   fused conv taps (resident: constant index_map)
    # o_ref:  (TM, TN)  output tile (full d_model width by default -> lane-dense stores)
    o_ref[...] = jnp.dot(
        xc_ref[...], w_ref[...],
        preferred_element_type=jnp.float32,
        precision=precision,
    ).astype(o_ref.dtype)


def token_embedding(x, w, *, compute_dtype=jnp.bfloat16, out_dtype=None,
                    tile_m=1024, tile_n=None):
    """Circular Conv1d(k=3, pad=1, bias=False), i.e. PyTorch TokenEmbedding.forward.

    x: [B, L, c_in]        (the tensor PyTorch's forward receives, before its permute)
    w: [3, c_in, d_model]  with w[k, i, o] == torch_conv_weight[o, i, k]
    returns [B, L, d_model] in out_dtype (default: x.dtype)

    compute_dtype: dtype of the MXU dot inputs (default bf16; accumulation stays f32).
                   Pass jnp.float32 (or None) for a full-precision path.
    """
    B, L, c_in = x.shape
    k_taps, c_in_w, d_model = w.shape
    assert k_taps == 3 and c_in_w == c_in
    out_dtype = out_dtype or x.dtype

    if compute_dtype is not None:
        x = x.astype(compute_dtype)
        w = w.astype(compute_dtype)

    # ---- im2col for the 3-tap circular conv (one fused XLA pass; c_in << d_model so
    #      this traffic is small next to the dominant output-store stream).
    # out[t] = x[(t-1)%L] @ w[0] + x[t] @ w[1] + x[(t+1)%L] @ w[2]
    x_prev = jnp.roll(x, 1, axis=1)
    x_next = jnp.roll(x, -1, axis=1)
    xc = jnp.concatenate([x_prev, x, x_next], axis=-1).reshape(B * L, 3 * c_in)
    w2 = w.reshape(3 * c_in, d_model)                       # contiguous reshape

    M, K = xc.shape
    bx = jnp.dtype(xc.dtype).itemsize
    bw = jnp.dtype(w2.dtype).itemsize
    bo = jnp.dtype(out_dtype).itemsize

    # Real VMEM layout sizes (lane dim pads to 128, sublane dim to 8).
    Kp_lanes = _round_up(K, 128)
    K_sub = _round_up(K, 8)

    # ---- generation-aware VMEM budget (v7x has only 64 MiB per TC).
    try:
        vmem_cap = int(pltpu.get_tpu_info().vmem_capacity_bytes)
    except Exception:
        vmem_cap = 64 * 2**20  # conservative (v7x-class) fallback
    vmem_budget = 40 * 2**20 if vmem_cap <= 64 * 2**20 else 64 * 2**20

    def footprint(tm, tn):
        tn_p = _round_up(tn, 128)
        return (2 * tm * Kp_lanes * bx          # double-buffered xc tile
                + 2 * K_sub * tn_p * bw         # weights (worst case: 2 buffers)
                + 2 * tm * tn_p * bo)           # double-buffered output tile

    # ---- M tile: multiple of 16 (bf16-safe), clamped to M, >= 2 tiles when possible
    #      so both v7x TensorCores are fed (no-op on v5e/v6e).
    TM = max(16, (int(tile_m) // 16) * 16)
    TM = min(TM, _round_up(M, 16))
    if pl.cdiv(M, TM) < 2 and M > 16:
        TM = max(16, _round_up(pl.cdiv(M, 2), 16))

    # ---- N tile: full width by default (resident weights, full-width stores, 1-D grid).
    if tile_n is None:
        TN = d_model
    else:
        TN = min(d_model, max(128, (int(tile_n) // 128) * 128))

    # Shrink TM (then TN, only as a last resort for huge d_model) to fit the budget.
    while footprint(TM, TN) > vmem_budget // 2 and TM > 256:
        TM = max(256, _round_up(TM // 2, 16))
    if footprint(TM, TN) > vmem_budget // 2 and TN > 128:
        avail = max(vmem_budget // 2 - 2 * TM * Kp_lanes * bx, 0)
        denom = 2 * (K_sub * bw + TM * bo)
        TN = min(d_model, max(128, (avail // denom // 128) * 128))

    vmem_limit = int(min(vmem_budget, max(2 * footprint(TM, TN), 8 * 2**20)))

    # f32 inputs -> force HIGHEST so the MXU doesn't take a reduced-precision path
    # (free: the kernel is memory-bound).
    precision = (jax.lax.Precision.HIGHEST
                 if jnp.dtype(xc.dtype) == jnp.float32 else None)
    kernel = functools.partial(_token_embedding_matmul_kernel, precision=precision)

    grid_m = pl.cdiv(M, TM)
    if TN >= d_model:
        # 1-D grid over M; weights constant-in-grid (DMA'd once), lane-dense full-width out.
        grid = (grid_m,)
        in_specs = [pl.BlockSpec((TM, K), lambda i: (i, 0)),
                    pl.BlockSpec((K, d_model), lambda i: (0, 0))]
        out_specs = pl.BlockSpec((TM, d_model), lambda i: (i, 0))
        dims = ("parallel",)
    else:
        # Fallback for very large d_model only.
        grid = (grid_m, pl.cdiv(d_model, TN))
        in_specs = [pl.BlockSpec((TM, K), lambda i, j: (i, 0)),
                    pl.BlockSpec((K, TN), lambda i, j: (0, j))]
        out_specs = pl.BlockSpec((TM, TN), lambda i, j: (i, j))
        dims = ("parallel", "parallel")

    out = pl.pallas_call(
        kernel,
        out_shape=jax.ShapeDtypeStruct((M, d_model), out_dtype),
        grid_spec=pltpu.PrefetchScalarGridSpec(
            num_scalar_prefetch=0,
            grid=grid,
            in_specs=in_specs,
            out_specs=out_specs,
        ),
        compiler_params=pltpu.CompilerParams(
            dimension_semantics=dims,
            vmem_limit_bytes=vmem_limit,
        ),
    )(xc, w2)

    # No pad/slice round trips: (M, d_model) -> (B, L, d_model) is a free reshape.
    return out.reshape(B, L, d_model)


def token_embedding_ref(x, w):
    """Plain-JAX reference of the circular conv (high precision, for correctness check)."""
    hp = jax.lax.Precision.HIGHEST
    x_prev = jnp.roll(x, 1, axis=1)
    x_next = jnp.roll(x, -1, axis=1)
    return (jnp.einsum('blc,cd->bld', x_prev, w[0], precision=hp) +
            jnp.einsum('blc,cd->bld', x,      w[1], precision=hp) +
            jnp.einsum('blc,cd->bld', x_next, w[2], precision=hp))


def init_weights(key, c_in, d_model, kernel_size=3):
    # kaiming_normal_(mode='fan_in', nonlinearity='leaky_relu'), torch defaults (a=0)
    fan_in = c_in * kernel_size
    gain = math.sqrt(2.0)
    std = gain / math.sqrt(fan_in)
    # stored directly as [kernel, c_in, d_model]; w[k, i, o] == torch_weight[o, i, k]
    return std * jax.random.normal(key, (kernel_size, c_in, d_model), dtype=jnp.float32)


if __name__ == "__main__":
    key = jax.random.PRNGKey(0)
    kx1, kw1, kx2, kw2, kx3, kw3 = jax.random.split(key, 6)
    bf = jnp.bfloat16

    # 1) Small shape, full-precision compute path -> tight check against the module spec.
    B, L, c_in, d_model = 2, 8, 4, 32
    x1 = jax.random.normal(kx1, (B, L, c_in), dtype=jnp.float32)
    w1 = init_weights(kw1, c_in, d_model)
    out1 = jax.block_until_ready(token_embedding(x1, w1, compute_dtype=jnp.float32))
    ref1 = token_embedding_ref(x1, w1)
    assert out1.shape == (B, L, d_model), out1.shape
    assert jnp.allclose(out1, ref1, atol=1e-4, rtol=1e-4), \
        f"max abs err {jnp.max(jnp.abs(out1 - ref1))}"

    # 2) Ragged M tiling (no padding path), default bf16 compute, f32 output.
    B2, L2, c2, d2 = 2, 200, 5, 256
    x2 = jax.random.normal(kx2, (B2, L2, c2), dtype=jnp.float32)
    w2 = init_weights(kw2, c2, d2)
    out2 = jax.block_until_ready(token_embedding(x2, w2, tile_m=128))
    ref2 = token_embedding_ref(x2.astype(bf).astype(jnp.float32),
                               w2.astype(bf).astype(jnp.float32))
    assert out2.shape == (B2, L2, d2), out2.shape
    assert jnp.allclose(out2, ref2, atol=2e-3, rtol=2e-3), \
        f"max abs err {jnp.max(jnp.abs(out2 - ref2))}"

    # 3) Non-128-multiple d_model + bf16 output stream (halves the dominant store traffic).
    B3, L3, c3, d3 = 2, 100, 7, 200
    x3 = jax.random.normal(kx3, (B3, L3, c3), dtype=jnp.float32)
    w3 = init_weights(kw3, c3, d3)
    out3 = jax.block_until_ready(
        token_embedding(x3, w3, out_dtype=jnp.bfloat16, tile_m=64))
    ref3 = token_embedding_ref(x3.astype(bf).astype(jnp.float32),
                               w3.astype(bf).astype(jnp.float32))
    assert out3.shape == (B3, L3, d3), out3.shape
    assert out3.dtype == jnp.bfloat16
    err3 = jnp.max(jnp.abs(out3.astype(jnp.float32) - ref3))
    assert jnp.allclose(out3.astype(jnp.float32), ref3, atol=2e-2, rtol=2e-2), \
        f"max abs err {err3}"

    print("KERNEL_OK")
</pallas_src>

<mosaic_0001>
module attributes {stable_mosaic.version = 11 : i64} {
  func.func @_token_embedding_matmul_kernel(%arg0: i32, %arg1: memref<16x12xf32, #tpu.memory_space<vmem>>, %arg2: memref<12x32xf32, #tpu.memory_space<vmem>>, %arg3: memref<16x32xf32, #tpu.memory_space<vmem>>) attributes {dimension_semantics = [#tpu.dimension_semantics<parallel>], iteration_bounds = array<i64: 1>, scalar_prefetch = 0 : i64, scratch_operands = 0 : i64, tpu.core_type = #tpu.core_type<tc>, window_params = [{transform_indices = @transform_0, window_bounds = array<i64: 16, 12>}, {pipeline_mode = #tpu.pipeline_mode<synchronous>, transform_indices = @transform_1, window_bounds = array<i64: 12, 32>}, {transform_indices = @transform_2, window_bounds = array<i64: 16, 32>}]} {
    %c0 = arith.constant 0 : index
    %c0_0 = arith.constant 0 : index
    %0 = vector.load %arg1[%c0, %c0_0] : memref<16x12xf32, #tpu.memory_space<vmem>>, vector<16x12xf32>
    %c0_1 = arith.constant 0 : index
    %c0_2 = arith.constant 0 : index
    %1 = vector.load %arg2[%c0_1, %c0_2] : memref<12x32xf32, #tpu.memory_space<vmem>>, vector<12x32xf32>
    %cst = arith.constant dense<0.000000e+00> : vector<16x32xf32>
    %2 = tpu.matmul %0, %1, %cst {dimension_numbers = #tpu.dot_dimension_numbers<[1], [0], [0], [1], [0, 0, 1, 1], [], []>, precision = #tpu.contract_precision<fp32>} : vector<16x12xf32>, vector<12x32xf32>, vector<16x32xf32> -> vector<16x32xf32>
    %c0_3 = arith.constant 0 : index
    %c0_4 = arith.constant 0 : index
    %3 = vector.load %arg3[%c0_3, %c0_4] : memref<16x32xf32, #tpu.memory_space<vmem>>, vector<16x32xf32>
    tpu.vector_store %arg3[%c0_3, %c0_4], %2 {strides = array<i32>} : memref<16x32xf32, #tpu.memory_space<vmem>>, vector<16x32xf32>,
    return
  }
  func.func @transform_0(%arg0: i32) -> (i32, i32) {
    %c0_i32 = arith.constant 0 : i32
    %c0_i32_0 = arith.constant 0 : i32
    return %arg0, %c0_i32 : i32, i32
  }
  func.func @transform_1(%arg0: i32) -> (i32, i32) {
    %c0_i32 = arith.constant 0 : i32
    %c0_i32_0 = arith.constant 0 : i32
    %c0_i32_1 = arith.constant 0 : i32
    return %c0_i32, %c0_i32_0 : i32, i32
  }
  func.func @transform_2(%arg0: i32) -> (i32, i32) {
    %c0_i32 = arith.constant 0 : i32
    %c0_i32_0 = arith.constant 0 : i32
    return %arg0, %c0_i32 : i32, i32
  }
}

</mosaic_0001>

<llo_original>
// kernel: tpu_custom_call.1
$region0: #{tpu_custom_call.1}
  #allocation0 [shape = 'u32[]', space=smem, size = 0x4, offset = 0x4, fixed_abs, tag = 'smem constant byte address 0x4 - core index']
  #allocation1 [shape = 'u32[72,128]{1,0:T(1,128)}', space=vmem, size = 0x9000, scoped, tag = 'internal scratch']
  %s0 = inlined_call_operand.hbm [shape: f32[16,12], index: 0, kind: input, shape index: {}]
  %s1 = inlined_call_operand.hbm [shape: f32[12,32], index: 1, kind: input, shape index: {}]
  %s2 = inlined_call_operand.hbm [shape: f32[16,32], index: 2, kind: output, shape index: {}]
  %s3 = sld [smem:[#allocation0]]
  $region26: #{tpu_custom_call.1} parent=0
    _
  %s5 = ssub.s32 1, %s3
  %s6 = scalar_select 0, %s5, %s3
  $region1: #{tpu_custom_call.1} parent=0
    #allocation2 [shape = 'u8[8192]{0}', space=vmem, size = 0x2000, scoped, tag = 'input window, operand 0, single buffered']
    #allocation3 [shape = 's32[1]{0}', space=sflag, size = 0x4, scoped, tag = 'scoped memory for tpu_custom_call.1']
    #allocation4 [shape = 's32[1]{0}', space=sflag, size = 0x4, scoped, tag = 'scoped memory for tpu_custom_call.1']
    #allocation5 [shape = 'u8[8192]{0}', space=vmem, size = 0x2000, scoped, tag = 'input window, operand 1, single buffered']
    #allocation6 [shape = 's32[1]{0}', space=sflag, size = 0x4, scoped, tag = 'scoped memory for tpu_custom_call.1']
    #allocation7 [shape = 'u8[8192]{0}', space=vmem, size = 0x2000, scoped, tag = 'output window, operand 0, single buffered']
    %7 = vsyncpa [#allocation3], 0
    %8 = vsyncpa [#allocation6], 0
    %9 = vsyncpa [#allocation4], 0
    // Predicated region
    $region2: #{tpu_custom_call.1} parent=1 // pred_check
      _
    $region3: #{tpu_custom_call.1} parent=1 // pred_check_branch
      %11 = sbr.rel (0) target = $region5
    $region4: #{tpu_custom_call.1} parent=1 // pred_region
      %13 = vsyncadd [#allocation3], 0
      %s14 = sshll.u32 %s0, 4
      %s15 = int_to_ptr.hbm [resolvable:$true] %s14
      %s16 = sshll.u32 [#allocation2], 4
      %s17 = int_to_ptr.vmem [resolvable:$true] %s16
      %22 = dma.hbm_to_vmem [thread:$0]  %s15, 256, %s17, [#allocation3], 128, 128, 8
    $region5: #{tpu_custom_call.1} parent=1 // pred_fallthru
      _
    // Predicated region
    $region6: #{tpu_custom_call.1} parent=1 // pred_check
      _
    $region7: #{tpu_custom_call.1} parent=1 // pred_check_branch
      %24 = sbr.rel (0) target = $region9
    $region8: #{tpu_custom_call.1} parent=1 // pred_region
      %26 = vsyncadd [#allocation6], 0
      %s27 = sshll.u32 %s1, 4
      %s28 = int_to_ptr.hbm [resolvable:$true] %s27
      %s29 = sshll.u32 [#allocation5], 4
      %s30 = int_to_ptr.vmem [resolvable:$true] %s29
      %35 = dma.hbm_to_vmem [thread:$0]  %s28, 256, %s30, [#allocation6], 128, 128, 8
    $region9: #{tpu_custom_call.1} parent=1 // pred_fallthru
      _
    // Predicated region
    $region10: #{tpu_custom_call.1} parent=1 // pred_check
      _
    $region11: #{tpu_custom_call.1} parent=1 // pred_check_branch
      %37 = sbr.rel (0) target = $region13
    $region12: #{tpu_custom_call.1} parent=1 // pred_region
      %39 = dma.done [#allocation3], 256
    $region13: #{tpu_custom_call.1} parent=1 // pred_fallthru
      _
    // Predicated region
    $region14: #{tpu_custom_call.1} parent=1 // pred_check
      _
    $region15: #{tpu_custom_call.1} parent=1 // pred_check_branch
      %41 = sbr.rel (0) target = $region17
    $region16: #{tpu_custom_call.1} parent=1 // pred_region
      %43 = dma.done [#allocation6], 256
    $region17: #{tpu_custom_call.1} parent=1 // pred_fallthru
      _
    %v44 = vld [vmem:[#allocation2] sm:$0xff]
    %v45 = vld [vmem:[#allocation2 + $0x8] sm:$0xff]
    %v46 = vld [vmem:[#allocation5] sm:$0xff]
    %v47 = vld [vmem:[#allocation5 + $0x8] sm:$0xf]
    %vm48 = vcmask 97280
    %v50 = vsel %vm48, %v44, 0
    %v53 = vsel %vm48, %v45, 0
    %vm55 = vcmask 1043456
    %v57 = vsel %vm55, %v47, 0
    %59 = vmatpush.msra.mxu0 0.0
    %60 = vmatpush.msra.mxu0 0.0
    %61 = vmatpush.msra.mxu0 0.0
    %62 = vmatpush.msra.mxu0 0.0
    %63 = vmatpush.msra.mxu0 0.0
    %64 = vmatpush.msra.mxu0 0.0
    %65 = vmatpush.msra.mxu0 0.0
    %66 = vmatpush.msra.mxu0 0.0
    %67 = vmatpush.msra.mxu0 0.0
    %68 = vmatpush.msra.mxu0 0.0
    %69 = vmatpush.msra.mxu0 0.0
    %70 = vmatpush.msra.mxu0 0.0
    %71 = vmatpush.msra.mxu0 0.0
    %72 = vmatpush.msra.mxu0 0.0
    %v73 = vand.u32 %v57, 4294901760
    %74 = vmatpush.msra.mxu0 %v73
    %v75 = vand.u32 %v46, 4294901760
    %76 = vmatpush.msra.mxu0 %v75
    %v77 = vand.u32 %v50, 4294901760
    %v78 = vsub.f32 %v50, %v77
    %v79 = vand.u32 %v78, 4294901760
    %v80 = vsub.f32 %v78, %v79
    %v81 = vand.u32 %v80, 4294901760
    %82 = vmatmul.f32.gmra.mxu0 %v81
    %v83 = vpop.f32.mrf.mxu0
    %v84 = vadd.f32 0.0, %v83
    %v85 = vand.u32 %v53, 4294901760
    %v86 = vsub.f32 %v53, %v85
    %v87 = vand.u32 %v86, 4294901760
    %v88 = vsub.f32 %v86, %v87
    %v89 = vand.u32 %v88, 4294901760
    %90 = vmatmul.f32.gmra.mxu0 %v89
    %v91 = vpop.f32.mrf.mxu0
    %v92 = vadd.f32 0.0, %v91
    %93 = vdwg.mxu0
    %94 = vmatpush.msra.mxu0 0.0
    %95 = vmatpush.msra.mxu0 0.0
    %96 = vmatpush.msra.mxu0 0.0
    %97 = vmatpush.msra.mxu0 0.0
    %98 = vmatpush.msra.mxu0 0.0
    %99 = vmatpush.msra.mxu0 0.0
    %100 = vmatpush.msra.mxu0 0.0
    %101 = vmatpush.msra.mxu0 0.0
    %102 = vmatpush.msra.mxu0 0.0
    %103 = vmatpush.msra.mxu0 0.0
    %104 = vmatpush.msra.mxu0 0.0
    %105 = vmatpush.msra.mxu0 0.0
    %106 = vmatpush.msra.mxu0 0.0
    %107 = vmatpush.msra.mxu0 0.0
    %v108 = vand.u32 %v57, 4294901760
    %v109 = vsub.f32 %v57, %v108
    %v110 = vand.u32 %v109, 4294901760
    %v111 = vsub.f32 %v109, %v110
    %v112 = vand.u32 %v111, 4294901760
    %113 = vmatpush.msra.mxu0 %v112
    %v114 = vand.u32 %v46, 4294901760
    %v115 = vsub.f32 %v46, %v114
    %v116 = vand.u32 %v115, 4294901760
    %v117 = vsub.f32 %v115, %v116
    %v118 = vand.u32 %v117, 4294901760
    %119 = vmatpush.msra.mxu0 %v118
    %v120 = vand.u32 %v50, 4294901760
    %121 = vmatmul.f32.gmra.mxu0 %v120
    %v122 = vpop.f32.mrf.mxu0
    %v123 = vadd.f32 %v84, %v122
    %v124 = vand.u32 %v53, 4294901760
    %125 = vmatmul.f32.gmra.mxu0 %v124
    %v126 = vpop.f32.mrf.mxu0
    %v127 = vadd.f32 %v92, %v126
    %128 = vdwg.mxu0
    %129 = vmatpush.msra.mxu0 0.0
    %130 = vmatpush.msra.mxu0 0.0
    %131 = vmatpush.msra.mxu0 0.0
    %132 = vmatpush.msra.mxu0 0.0
    %133 = vmatpush.msra.mxu0 0.0
    %134 = vmatpush.msra.mxu0 0.0
    %135 = vmatpush.msra.mxu0 0.0
    %136 = vmatpush.msra.mxu0 0.0
    %137 = vmatpush.msra.mxu0 0.0
    %138 = vmatpush.msra.mxu0 0.0
    %139 = vmatpush.msra.mxu0 0.0
    %140 = vmatpush.msra.mxu0 0.0
    %141 = vmatpush.msra.mxu0 0.0
    %142 = vmatpush.msra.mxu0 0.0
    %v143 = vand.u32 %v57, 4294901760
    %v144 = vsub.f32 %v57, %v143
    %145 = vmatpush.msra.mxu0 %v144
    %v146 = vand.u32 %v46, 4294901760
    %v147 = vsub.f32 %v46, %v146
    %148 = vmatpush.msra.mxu0 %v147
    %v149 = vand.u32 %v50, 4294901760
    %v150 = vsub.f32 %v50, %v149
    %151 = vmatmul.f32.gmra.mxu0 %v150
    %v152 = vpop.f32.mrf.mxu0
    %v153 = vadd.f32 %v123, %v152
    %v154 = vand.u32 %v53, 4294901760
    %v155 = vsub.f32 %v53, %v154
    %156 = vmatmul.f32.gmra.mxu0 %v155
    %v157 = vpop.f32.mrf.mxu0
    %v158 = vadd.f32 %v127, %v157
    %159 = vdwg.mxu0
    %160 = vmatpush.msra.mxu0 0.0
    %161 = vmatpush.msra.mxu0 0.0
    %162 = vmatpush.msra.mxu0 0.0
    %163 = vmatpush.msra.mxu0 0.0
    %164 = vmatpush.msra.mxu0 0.0
    %165 = vmatpush.msra.mxu0 0.0
    %166 = vmatpush.msra.mxu0 0.0
    %167 = vmatpush.msra.mxu0 0.0
    %168 = vmatpush.msra.mxu0 0.0
    %169 = vmatpush.msra.mxu0 0.0
    %170 = vmatpush.msra.mxu0 0.0
    %171 = vmatpush.msra.mxu0 0.0
    %172 = vmatpush.msra.mxu0 0.0
    %173 = vmatpush.msra.mxu0 0.0
    %v174 = vand.u32 %v57, 4294901760
    %175 = vmatpush.msra.mxu0 %v174
    %v176 = vand.u32 %v46, 4294901760
    %177 = vmatpush.msra.mxu0 %v176
    %v178 = vand.u32 %v50, 4294901760
    %v179 = vsub.f32 %v50, %v178
    %v180 = vand.u32 %v179, 4294901760
    %181 = vmatmul.f32.gmra.mxu0 %v180
    %v182 = vpop.f32.mrf.mxu0
    %v183 = vadd.f32 %v153, %v182
    %v184 = vand.u32 %v53, 4294901760
    %v185 = vsub.f32 %v53, %v184
    %v186 = vand.u32 %v185, 4294901760
    %187 = vmatmul.f32.gmra.mxu0 %v186
    %v188 = vpop.f32.mrf.mxu0
    %v189 = vadd.f32 %v158, %v188
    %190 = vdwg.mxu0
    %191 = vmatpush.msra.mxu0 0.0
    %192 = vmatpush.msra.mxu0 0.0
    %193 = vmatpush.msra.mxu0 0.0
    %194 = vmatpush.msra.mxu0 0.0
    %195 = vmatpush.msra.mxu0 0.0
    %196 = vmatpush.msra.mxu0 0.0
    %197 = vmatpush.msra.mxu0 0.0
    %198 = vmatpush.msra.mxu0 0.0
    %199 = vmatpush.msra.mxu0 0.0
    %200 = vmatpush.msra.mxu0 0.0
    %201 = vmatpush.msra.mxu0 0.0
    %202 = vmatpush.msra.mxu0 0.0
    %203 = vmatpush.msra.mxu0 0.0
    %204 = vmatpush.msra.mxu0 0.0
    %v205 = vand.u32 %v57, 4294901760
    %v206 = vsub.f32 %v57, %v205
    %v207 = vand.u32 %v206, 4294901760
    %208 = vmatpush.msra.mxu0 %v207
    %v209 = vand.u32 %v46, 4294901760
    %v210 = vsub.f32 %v46, %v209
    %v211 = vand.u32 %v210, 4294901760
    %212 = vmatpush.msra.mxu0 %v211
    %v213 = vand.u32 %v50, 4294901760
    %214 = vmatmul.f32.gmra.mxu0 %v213
    %v215 = vpop.f32.mrf.mxu0
    %v216 = vadd.f32 %v183, %v215
    %v217 = vand.u32 %v53, 4294901760
    %218 = vmatmul.f32.gmra.mxu0 %v217
    %v219 = vpop.f32.mrf.mxu0
    %v220 = vadd.f32 %v189, %v219
    %221 = vdwg.mxu0
    %222 = vmatpush.msra.mxu0 0.0
    %223 = vmatpush.msra.mxu0 0.0
    %224 = vmatpush.msra.mxu0 0.0
    %225 = vmatpush.msra.mxu0 0.0
    %226 = vmatpush.msra.mxu0 0.0
    %227 = vmatpush.msra.mxu0 0.0
    %228 = vmatpush.msra.mxu0 0.0
    %229 = vmatpush.msra.mxu0 0.0
    %230 = vmatpush.msra.mxu0 0.0
    %231 = vmatpush.msra.mxu0 0.0
    %232 = vmatpush.msra.mxu0 0.0
    %233 = vmatpush.msra.mxu0 0.0
    %234 = vmatpush.msra.mxu0 0.0
    %235 = vmatpush.msra.mxu0 0.0
    %v236 = vand.u32 %v57, 4294901760
    %237 = vmatpush.msra.mxu0 %v236
    %v238 = vand.u32 %v46, 4294901760
    %239 = vmatpush.msra.mxu0 %v238
    %v240 = vand.u32 %v50, 4294901760
    %241 = vmatmul.f32.gmra.mxu0 %v240
    %v242 = vpop.f32.mrf.mxu0
    %v243 = vadd.f32 %v216, %v242
    %v244 = vand.u32 %v53, 4294901760
    %245 = vmatmul.f32.gmra.mxu0 %v244
    %v246 = vpop.f32.mrf.mxu0
    %v247 = vadd.f32 %v220, %v246
    %248 = vdwg.mxu0
    %vm249 = vcmask 261120
    %250 = vst.msk [vmem:[#allocation7] sm:$0xff] %vm249, %v243
    %251 = vst.msk [vmem:[#allocation7 + $0x8] sm:$0xff] %vm249, %v247
    // Predicated region
    $region18: #{tpu_custom_call.1} parent=1 // pred_check
      _
    $region19: #{tpu_custom_call.1} parent=1 // pred_check_branch
      %253 = sbr.rel (0) target = $region21
    $region20: #{tpu_custom_call.1} parent=1 // pred_region
      %255 = vsyncadd [#allocation4], 0
      %s256 = sshll.u32 [#allocation7], 4
      %s257 = int_to_ptr.vmem [resolvable:$true] %s256
      %s258 = sshll.u32 %s2, 4
      %s259 = int_to_ptr.hbm [resolvable:$true] %s258
      %264 = dma.vmem_to_hbm [thread:$0]  %s257, 256, %s259, [#allocation4], 128, 128, 8
    $region21: #{tpu_custom_call.1} parent=1 // pred_fallthru
      _
    // Predicated region
    $region22: #{tpu_custom_call.1} parent=1 // pred_check
      _
    $region23: #{tpu_custom_call.1} parent=1 // pred_check_branch
      %266 = sbr.rel (0) target = $region25
    $region24: #{tpu_custom_call.1} parent=1 // pred_region
      %268 = dma.done [#allocation4], 256
    $region25: #{tpu_custom_call.1} parent=1 // pred_fallthru
      _
    %269 = vsyncpa [#allocation3], 1
    %270 = vsyncpa [#allocation6], 1
    %271 = vsyncpa [#allocation4], 1

</llo_original>
